<compile_context>
chip_gen: v6e
topology: v6e:2x2x1
jax: 0.10.0
libtpu: 0.0.40
codegen_flags: <defaults>
</compile_context>

<pallas_src>
import functools
import math

import jax
import jax.numpy as jnp
from jax.experimental import pallas as pl
from jax.experimental.pallas import tpu as pltpu


def _round_up(a, m):
    return -(-a // m) * m


# --------------------------------------------------------------------------- #
# Capability probe: does this jax/Mosaic accept pipeline_mode=pl.Buffered(1)?
# Narrow, one-time, construction + lowering of a tiny kernel — the real kernel
# is then built once with known-good settings (no broad runtime fallback).
# --------------------------------------------------------------------------- #
def _probe_buffered_support():
    if not hasattr(pl, "Buffered"):
        return False
    try:
        spec = pl.BlockSpec((8, 128), lambda i: (0, 0), pipeline_mode=pl.Buffered(1))

        def _copy(a_ref, o_ref):
            o_ref[...] = a_ref[...]

        fn = pl.pallas_call(
            _copy,
            out_shape=jax.ShapeDtypeStruct((8, 128), jnp.float32),
            grid=(1,),
            in_specs=[spec],
            out_specs=pl.BlockSpec((8, 128), lambda i: (0, 0)),
        )
        pl.lower_as_mlir(fn, jnp.zeros((8, 128), jnp.float32))
        return True
    except Exception:
        return False


_HAS_BUFFERED = _probe_buffered_support()


def _vmem_budgets():
    """(vmem_limit_bytes, tile_budget_bytes) derived from the actual chip."""
    try:
        cap = int(pltpu.get_tpu_info().vmem_capacity_bytes)
    except Exception:
        cap = 0
    if cap <= 0:
        cap = 64 * 1024 * 1024  # conservative fallback (v7x physical size)
    limit = (cap * 3) // 4      # ~96 MiB on v5e/v6e, ~48 MiB on v7x
    budget = (cap * 5) // 8     # ~80 MiB on v5e/v6e, ~40 MiB on v7x
    return limit, budget


# --------------------------------------------------------------------------- #
# Kernels
# --------------------------------------------------------------------------- #
def _mlp_kernel(x_ref, g_ref, beta_ref, w1_ref, b1_ref, w2_ref, b2_ref, o_ref):
    # LayerNorm over encoder dim (eps=1e-5, elementwise affine), f32 math,
    # one-pass variance so only one (tm, E) f32 temp stays live.
    x = x_ref[...].astype(jnp.float32)
    mean = jnp.mean(x, axis=-1, keepdims=True)
    var = jnp.mean(x * x, axis=-1, keepdims=True) - mean * mean
    x = (x - mean) * jax.lax.rsqrt(var + 1e-5)
    x = x * g_ref[...].astype(jnp.float32) + beta_ref[...].astype(jnp.float32)

    # Linear(E -> d) + ReLU.  MXU operands in the weights' dtype; f32 accumulate.
    w1 = w1_ref[...]
    h = jnp.dot(x.astype(w1.dtype), w1, preferred_element_type=jnp.float32)
    h = jnp.maximum(h + b1_ref[...].astype(jnp.float32), 0.0)

    # Linear(d -> d).
    w2 = w2_ref[...]
    y = jnp.dot(h.astype(w2.dtype), w2, preferred_element_type=jnp.float32)
    o_ref[...] = (y + b2_ref[...].astype(jnp.float32)).astype(o_ref.dtype)


def _mlp_kernel_ktiled(x_ref, g_ref, beta_ref, w1_ref, b1_ref, w2_ref, b2_ref,
                       o_ref, h_acc):
    # Grid = (row tiles [parallel], encoder-dim chunks [arbitrary]).
    # x row tile is resident across k; w1 / LN-affine chunks stream over k;
    # the first matmul accumulates into a f32 VMEM scratch.
    k = pl.program_id(1)
    nk = pl.num_programs(1)
    tk = w1_ref.shape[0]

    @pl.when(k == 0)
    def _():
        h_acc[...] = jnp.zeros_like(h_acc)

    # LayerNorm stats need the full row; x tile is already resident, so the
    # per-step recompute is cheap VPU/XLU filler on a mem-bound kernel.
    x = x_ref[...].astype(jnp.float32)
    mean = jnp.mean(x, axis=-1, keepdims=True)
    var = jnp.mean(x * x, axis=-1, keepdims=True) - mean * mean
    rstd = jax.lax.rsqrt(var + 1e-5)

    start = pl.multiple_of(k * tk, tk)
    xk = x_ref[:, pl.ds(start, tk)].astype(jnp.float32)
    xk = (xk - mean) * rstd
    xk = xk * g_ref[...].astype(jnp.float32) + beta_ref[...].astype(jnp.float32)

    w1 = w1_ref[...]
    h_acc[...] += jnp.dot(xk.astype(w1.dtype), w1, preferred_element_type=jnp.float32)

    @pl.when(k == nk - 1)
    def _():
        h = jnp.maximum(h_acc[...] + b1_ref[...].astype(jnp.float32), 0.0)
        w2 = w2_ref[...]
        y = jnp.dot(h.astype(w2.dtype), w2, preferred_element_type=jnp.float32)
        o_ref[...] = (y + b2_ref[...].astype(jnp.float32)).astype(o_ref.dtype)


# --------------------------------------------------------------------------- #
# Row-tile derivation
# --------------------------------------------------------------------------- #
def _derive_tm(n, e, dp, x_it, w_it, o_it, budget, *, tk=None):
    """Largest aligned row tile that fits the VMEM budget, keeping >=4 grid
    steps when there are enough rows (>= 2 pipelined iterations per v7x core)."""
    buf = 1 if _HAS_BUFFERED else 2  # residency factor for constant-index operands
    if tk is None:
        # All weights resident.
        const_bytes = buf * (2 * e + e * dp + dp * dp + 2 * dp) * w_it
        row_bytes = (2 * e * x_it + 2 * dp * o_it      # pipelined x / out tiles
                     + 4 * (2 * e + 2 * dp)            # f32 LN/matmul temps (x, xn, h, y)
                     + w_it * (e + dp))                # MXU-dtype cast temps
    else:
        # K-tiled: w2/b1/b2 resident; w1 + LN-affine chunks streamed; f32 h accumulator.
        const_bytes = (buf * (dp * dp + 2 * dp) * w_it
                       + 2 * (tk * dp + 2 * tk) * w_it)
        row_bytes = (2 * e * x_it + 2 * dp * o_it
                     + 4 * dp                          # f32 h accumulator scratch
                     + 4 * (e + tk + 2 * dp)           # f32 temps
                     + w_it * (tk + dp))               # cast temps
    row_bytes = int(row_bytes * 1.25)                  # spill / compiler-scratch margin

    avail = max(budget - const_bytes, 8 * row_bytes)
    tm = min(1024, avail // row_bytes)

    # Sublane-packing alignment: 8 rows for f32, 16 for bf16, 32 for int8.
    min_item = min(x_it, o_it)
    align = 8 * max(1, 4 // max(1, min_item))
    if n > 4 * align:
        tm = min(tm, _round_up(-(-n // 4), align))     # >= 4 grid steps
    tm = min(tm, _round_up(n, align))
    tm = max(align, tm)
    # MXU/sublane-friendly M when the tile is large.
    for m in (512, 256, 128, align):
        if tm >= m:
            tm = (tm // m) * m
            break
    return int(tm)


# --------------------------------------------------------------------------- #
# pallas_call wrappers
# --------------------------------------------------------------------------- #
def _run_single(x2, gamma, beta, w1, b1, w2, b2, *, n, E, Dp, tm, out_dtype,
                vmem_limit, cost):
    const_kw = {"pipeline_mode": pl.Buffered(1)} if _HAS_BUFFERED else {}

    def const_spec(shape):
        # Constant index_map: block never changes across grid steps.
        return pl.BlockSpec(shape, lambda i: (0, 0), **const_kw)

    # TODO(synk): optionally sweep pipeline_mode=pl.Buffered(3) on the x spec
    # on v6e when profiling shows exposed input DMA at small n.
    in_specs = [
        pl.BlockSpec((tm, E), lambda i: (i, 0)),   # x row tile
        const_spec((1, E)),                        # ln gamma
        const_spec((1, E)),                        # ln beta
        const_spec((E, Dp)),                       # w1
        const_spec((1, Dp)),                       # b1
        const_spec((Dp, Dp)),                      # w2
        const_spec((1, Dp)),                       # b2
    ]
    return pl.pallas_call(
        _mlp_kernel,
        out_shape=jax.ShapeDtypeStruct((n, Dp), out_dtype),
        grid_spec=pltpu.PrefetchScalarGridSpec(
            num_scalar_prefetch=0,
            grid=(pl.cdiv(n, tm),),
            in_specs=in_specs,
            out_specs=pl.BlockSpec((tm, Dp), lambda i: (i, 0)),
        ),
        compiler_params=pltpu.CompilerParams(
            dimension_semantics=("parallel",),
            vmem_limit_bytes=vmem_limit,
        ),
        cost_estimate=cost,
    )(x2, gamma, beta, w1, b1, w2, b2)


def _run_ktiled(x2, gamma, beta, w1, b1, w2, b2, *, n, E, Dp, tm, tk, out_dtype,
                vmem_limit, cost):
    const_kw = {"pipeline_mode": pl.Buffered(1)} if _HAS_BUFFERED else {}

    def const_spec(shape):
        return pl.BlockSpec(shape, lambda i, k: (0, 0), **const_kw)

    in_specs = [
        pl.BlockSpec((tm, E), lambda i, k: (i, 0)),    # x rows, resident across k
        pl.BlockSpec((1, tk), lambda i, k: (0, k)),    # ln gamma chunk
        pl.BlockSpec((1, tk), lambda i, k: (0, k)),    # ln beta chunk
        pl.BlockSpec((tk, Dp), lambda i, k: (k, 0)),   # w1 chunk (streamed)
        const_spec((1, Dp)),                           # b1
        const_spec((Dp, Dp)),                          # w2
        const_spec((1, Dp)),                           # b2
    ]
    return pl.pallas_call(
        _mlp_kernel_ktiled,
        out_shape=jax.ShapeDtypeStruct((n, Dp), out_dtype),
        grid_spec=pltpu.PrefetchScalarGridSpec(
            num_scalar_prefetch=0,
            grid=(pl.cdiv(n, tm), E // tk),
            in_specs=in_specs,
            out_specs=pl.BlockSpec((tm, Dp), lambda i, k: (i, 0)),
            scratch_shapes=[pltpu.VMEM((tm, Dp), jnp.float32)],
        ),
        compiler_params=pltpu.CompilerParams(
            dimension_semantics=("parallel", "arbitrary"),
            vmem_limit_bytes=vmem_limit,
        ),
        cost_estimate=cost,
    )(x2, gamma, beta, w1, b1, w2, b2)


# --------------------------------------------------------------------------- #
# Public entry point
# --------------------------------------------------------------------------- #
def mace_encoder_to_trunk(x, params, *, tm=None, tk=None, force_k_tiling=False):
    """x: (..., encoder_dim), any float dtype (bf16 OK — halves the dominant
    input stream; LN math is f32 in VMEM).  Returns (..., d_single) in the
    weights' dtype.  Call under jit so the d_single-depad slice fuses."""
    gamma, beta = params["ln_gamma"], params["ln_beta"]
    w1, b1, w2, b2 = params["w1"], params["b1"], params["w2"], params["b2"]
    E = gamma.shape[-1]
    D = w2.shape[-1]
    out_dtype = w2.dtype

    lead = x.shape[:-1]
    n = math.prod(lead) if lead else 1
    x2 = x.reshape(n, E)  # no host dtype cast, no host row padding

    # Lane-dense second matmul + unmasked output stores: pad d_single to 128.
    # (encoder_dim is NOT padded — that would change the LayerNorm mean/var.)
    Dp = _round_up(D, 128)
    if Dp != D:
        w1 = jnp.pad(w1, ((0, 0), (0, Dp - D)))
        b1 = jnp.pad(b1, ((0, 0), (0, Dp - D)))
        w2 = jnp.pad(w2, ((0, Dp - D), (0, Dp - D)))
        b2 = jnp.pad(b2, ((0, 0), (0, Dp - D)))

    vmem_limit, vmem_budget = _vmem_budgets()
    x_it = jnp.dtype(x2.dtype).itemsize
    w_it = jnp.dtype(w1.dtype).itemsize
    o_it = jnp.dtype(out_dtype).itemsize

    # Decide whether to stream w1 over encoder_dim (K-tiling).
    buf = 1 if _HAS_BUFFERED else 2
    resident_weight_bytes = buf * (2 * E + E * Dp + Dp * Dp + 2 * Dp) * w_it
    use_kt = bool(force_k_tiling) or resident_weight_bytes > vmem_budget // 2
    if use_kt:
        if tk is None:
            tk = next((c for c in (512, 256, 128) if E % c == 0), None)
        elif E % tk != 0:
            tk = None
        if tk is None:
            use_kt = False  # TODO(synk): K-tiling for E not divisible by a 128-multiple chunk

    if tm is None:
        tm = _derive_tm(n, E, Dp, x_it, w_it, o_it, vmem_budget,
                        tk=tk if use_kt else None)

    cost = pl.CostEstimate(
        flops=2 * n * (E * Dp + Dp * Dp),
        transcendentals=n,  # one rsqrt per row
        bytes_accessed=(n * E * x_it + n * Dp * o_it
                        + (2 * E + E * Dp + Dp * Dp + 2 * Dp) * w_it),
    )

    kwargs = dict(n=n, E=E, Dp=Dp, tm=tm, out_dtype=out_dtype,
                  vmem_limit=vmem_limit, cost=cost)
    if use_kt:
        out = _run_ktiled(x2, gamma, beta, w1, b1, w2, b2, tk=tk, **kwargs)
    else:
        out = _run_single(x2, gamma, beta, w1, b1, w2, b2, **kwargs)

    if Dp != D:
        out = out[:, :D]  # fuses with surrounding jit; no standalone depad copy
    return out.reshape(*lead, D)


# --------------------------------------------------------------------------- #
# Parameters & pure-JAX reference
# --------------------------------------------------------------------------- #
def init_params(key, encoder_dim, d_single, dtype=jnp.float32):
    """Synthetic init matching the module's parameter shapes.  Weights stored
    (in, out) == torch W.T.  Pass dtype=jnp.bfloat16 for bf16 MXU operands on
    v6e/v7x (accumulation stays f32 in-kernel)."""
    k1, k2, k3, k4 = jax.random.split(key, 4)
    s1 = 1.0 / math.sqrt(encoder_dim)
    s2 = 1.0 / math.sqrt(d_single)
    return {
        "ln_gamma": jnp.ones((1, encoder_dim), dtype),
        "ln_beta": jnp.zeros((1, encoder_dim), dtype),
        "w1": jax.random.uniform(k1, (encoder_dim, d_single), dtype, -s1, s1),
        "b1": jax.random.uniform(k2, (1, d_single), dtype, -s1, s1),
        "w2": jax.random.uniform(k3, (d_single, d_single), dtype, -s2, s2),
        "b2": jax.random.uniform(k4, (1, d_single), dtype, -s2, s2),
    }


def _reference(x, p):
    x = x.astype(jnp.float32)
    mean = jnp.mean(x, -1, keepdims=True)
    var = jnp.mean((x - mean) ** 2, -1, keepdims=True)
    xn = (x - mean) / jnp.sqrt(var + 1e-5)
    xn = xn * p["ln_gamma"][0].astype(jnp.float32) + p["ln_beta"][0].astype(jnp.float32)
    h = jnp.maximum(xn @ p["w1"].astype(jnp.float32) + p["b1"][0].astype(jnp.float32), 0.0)
    return h @ p["w2"].astype(jnp.float32) + p["b2"][0].astype(jnp.float32)


if __name__ == "__main__":
    key = jax.random.PRNGKey(0)
    kx, kp, kx2, kp2 = jax.random.split(key, 4)

    # ---- default path: all weights resident, 1-D "parallel" row grid --------
    encoder_dim, d_single = 32, 64
    batch, seq = 2, 8
    x = jax.random.normal(kx, (batch, seq, encoder_dim), jnp.float32)
    params = init_params(kp, encoder_dim, d_single)

    fwd = jax.jit(mace_encoder_to_trunk)  # jit so the Dp->D depad slice fuses
    out = jax.block_until_ready(fwd(x, params))
    ref = _reference(x, params)
    assert out.shape == (batch, seq, d_single)
    assert out.dtype == params["w2"].dtype
    assert jnp.allclose(out, ref, atol=2e-4, rtol=2e-4), float(jnp.max(jnp.abs(out - ref)))

    # ---- K-tiled path (streamed encoder_dim), exercised explicitly ----------
    encoder_dim2, d_single2 = 256, 128
    x2 = jax.random.normal(kx2, (2, 16, encoder_dim2), jnp.float32)
    params2 = init_params(kp2, encoder_dim2, d_single2)
    fwd_kt = jax.jit(functools.partial(mace_encoder_to_trunk,
                                       force_k_tiling=True, tk=128))
    out2 = jax.block_until_ready(fwd_kt(x2, params2))
    ref2 = _reference(x2, params2)
    assert out2.shape == (2, 16, d_single2)
    assert out2.dtype == params2["w2"].dtype
    assert jnp.allclose(out2, ref2, atol=2e-3, rtol=2e-3), float(jnp.max(jnp.abs(out2 - ref2)))

    print("KERNEL_OK")
</pallas_src>

<mosaic_0001>
module attributes {stable_mosaic.version = 11 : i64} {
  func.func @_mlp_kernel(%arg0: i32, %arg1: memref<16x32xf32, #tpu.memory_space<vmem>>, %arg2: memref<1x32xf32, #tpu.memory_space<vmem>>, %arg3: memref<1x32xf32, #tpu.memory_space<vmem>>, %arg4: memref<32x128xf32, #tpu.memory_space<vmem>>, %arg5: memref<1x128xf32, #tpu.memory_space<vmem>>, %arg6: memref<128x128xf32, #tpu.memory_space<vmem>>, %arg7: memref<1x128xf32, #tpu.memory_space<vmem>>, %arg8: memref<16x128xf32, #tpu.memory_space<vmem>>) attributes {dimension_semantics = [#tpu.dimension_semantics<parallel>], iteration_bounds = array<i64: 1>, scalar_prefetch = 0 : i64, scratch_operands = 0 : i64, tpu.core_type = #tpu.core_type<tc>, window_params = [{transform_indices = @transform_0, window_bounds = array<i64: 16, 32>}, {pipeline_mode = #tpu.pipeline_mode<synchronous>, transform_indices = @transform_1, window_bounds = array<i64: 1, 32>}, {pipeline_mode = #tpu.pipeline_mode<synchronous>, transform_indices = @transform_2, window_bounds = array<i64: 1, 32>}, {pipeline_mode = #tpu.pipeline_mode<synchronous>, transform_indices = @transform_3, window_bounds = array<i64: 32, 128>}, {pipeline_mode = #tpu.pipeline_mode<synchronous>, transform_indices = @transform_4, window_bounds = array<i64: 1, 128>}, {pipeline_mode = #tpu.pipeline_mode<synchronous>, transform_indices = @transform_5, window_bounds = array<i64: 128, 128>}, {pipeline_mode = #tpu.pipeline_mode<synchronous>, transform_indices = @transform_6, window_bounds = array<i64: 1, 128>}, {transform_indices = @transform_7, window_bounds = array<i64: 16, 128>}]} {
    %c0 = arith.constant 0 : index
    %c0_0 = arith.constant 0 : index
    %0 = vector.load %arg1[%c0, %c0_0] : memref<16x32xf32, #tpu.memory_space<vmem>>, vector<16x32xf32>
    %cst = arith.constant dense<0.000000e+00> : vector<16xf32>
    %1 = vector.multi_reduction <add>, %0, %cst [1] : vector<16x32xf32> to vector<16xf32>
    %2 = vector.shape_cast %1 : vector<16xf32> to vector<16x1xf32>
    %cst_1 = arith.constant 3.200000e+01 : f32
    %3 = vector.broadcast %cst_1 : f32 to vector<16x1xf32>
    %4 = arith.divf %2, %3 : vector<16x1xf32>
    %5 = arith.mulf %0, %0 : vector<16x32xf32>
    %cst_2 = arith.constant dense<0.000000e+00> : vector<16xf32>
    %6 = vector.multi_reduction <add>, %5, %cst_2 [1] : vector<16x32xf32> to vector<16xf32>
    %7 = vector.shape_cast %6 : vector<16xf32> to vector<16x1xf32>
    %cst_3 = arith.constant 3.200000e+01 : f32
    %8 = vector.broadcast %cst_3 : f32 to vector<16x1xf32>
    %9 = arith.divf %7, %8 : vector<16x1xf32>
    %10 = arith.mulf %4, %4 : vector<16x1xf32>
    %11 = arith.subf %9, %10 : vector<16x1xf32>
    %12 = vector.broadcast %4 : vector<16x1xf32> to vector<16x32xf32>
    %13 = arith.subf %0, %12 : vector<16x32xf32>
    %cst_4 = arith.constant 9.99999974E-6 : f32
    %14 = vector.broadcast %cst_4 : f32 to vector<16x1xf32>
    %15 = arith.addf %11, %14 : vector<16x1xf32>
    %16 = math.rsqrt %15 : vector<16x1xf32>
    %17 = vector.broadcast %16 : vector<16x1xf32> to vector<16x32xf32>
    %18 = arith.mulf %13, %17 : vector<16x32xf32>
    %c0_5 = arith.constant 0 : index
    %c0_6 = arith.constant 0 : index
    %19 = vector.load %arg2[%c0_5, %c0_6] : memref<1x32xf32, #tpu.memory_space<vmem>>, vector<1x32xf32>
    %20 = vector.broadcast %19 : vector<1x32xf32> to vector<16x32xf32>
    %21 = arith.mulf %18, %20 : vector<16x32xf32>
    %c0_7 = arith.constant 0 : index
    %c0_8 = arith.constant 0 : index
    %22 = vector.load %arg3[%c0_7, %c0_8] : memref<1x32xf32, #tpu.memory_space<vmem>>, vector<1x32xf32>
    %23 = vector.broadcast %22 : vector<1x32xf32> to vector<16x32xf32>
    %24 = arith.addf %21, %23 : vector<16x32xf32>
    %c0_9 = arith.constant 0 : index
    %c0_10 = arith.constant 0 : index
    %25 = vector.load %arg4[%c0_9, %c0_10] : memref<32x128xf32, #tpu.memory_space<vmem>>, vector<32x128xf32>
    %cst_11 = arith.constant dense<0.000000e+00> : vector<16x128xf32>
    %26 = tpu.matmul %24, %25, %cst_11 {dimension_numbers = #tpu.dot_dimension_numbers<[1], [0], [0], [1], [0, 0, 1, 1], [], []>} : vector<16x32xf32>, vector<32x128xf32>, vector<16x128xf32> -> vector<16x128xf32>
    %c0_12 = arith.constant 0 : index
    %c0_13 = arith.constant 0 : index
    %27 = vector.load %arg5[%c0_12, %c0_13] : memref<1x128xf32, #tpu.memory_space<vmem>>, vector<1x128xf32>
    %28 = vector.broadcast %27 : vector<1x128xf32> to vector<16x128xf32>
    %29 = arith.addf %26, %28 : vector<16x128xf32>
    %cst_14 = arith.constant 0.000000e+00 : f32
    %30 = vector.broadcast %cst_14 : f32 to vector<16x128xf32>
    %31 = arith.maximumf %29, %30 : vector<16x128xf32>
    %c0_15 = arith.constant 0 : index
    %c0_16 = arith.constant 0 : index
    %32 = vector.load %arg6[%c0_15, %c0_16] : memref<128x128xf32, #tpu.memory_space<vmem>>, vector<128x128xf32>
    %cst_17 = arith.constant dense<0.000000e+00> : vector<16x128xf32>
    %33 = tpu.matmul %31, %32, %cst_17 {dimension_numbers = #tpu.dot_dimension_numbers<[1], [0], [0], [1], [0, 0, 1, 1], [], []>} : vector<16x128xf32>, vector<128x128xf32>, vector<16x128xf32> -> vector<16x128xf32>
    %c0_18 = arith.constant 0 : index
    %c0_19 = arith.constant 0 : index
    %34 = vector.load %arg7[%c0_18, %c0_19] : memref<1x128xf32, #tpu.memory_space<vmem>>, vector<1x128xf32>
    %35 = vector.broadcast %34 : vector<1x128xf32> to vector<16x128xf32>
    %36 = arith.addf %33, %35 : vector<16x128xf32>
    %c0_20 = arith.constant 0 : index
    %c0_21 = arith.constant 0 : index
    %37 = vector.load %arg8[%c0_20, %c0_21] : memref<16x128xf32, #tpu.memory_space<vmem>>, vector<16x128xf32>
    tpu.vector_store %arg8[%c0_20, %c0_21], %36 {strides = array<i32>} : memref<16x128xf32, #tpu.memory_space<vmem>>, vector<16x128xf32>,
    return
  }
  func.func @transform_0(%arg0: i32) -> (i32, i32) {
    %c0_i32 = arith.constant 0 : i32
    %c0_i32_0 = arith.constant 0 : i32
    return %arg0, %c0_i32 : i32, i32
  }
  func.func @transform_1(%arg0: i32) -> (i32, i32) {
    %c0_i32 = arith.constant 0 : i32
    %c0_i32_0 = arith.constant 0 : i32
    %c0_i32_1 = arith.constant 0 : i32
    return %c0_i32, %c0_i32_0 : i32, i32
  }
  func.func @transform_2(%arg0: i32) -> (i32, i32) {
    %c0_i32 = arith.constant 0 : i32
    %c0_i32_0 = arith.constant 0 : i32
    %c0_i32_1 = arith.constant 0 : i32
    return %c0_i32, %c0_i32_0 : i32, i32
  }
  func.func @transform_3(%arg0: i32) -> (i32, i32) {
    %c0_i32 = arith.constant 0 : i32
    %c0_i32_0 = arith.constant 0 : i32
    %c0_i32_1 = arith.constant 0 : i32
    return %c0_i32, %c0_i32_0 : i32, i32
  }
  func.func @transform_4(%arg0: i32) -> (i32, i32) {
    %c0_i32 = arith.constant 0 : i32
    %c0_i32_0 = arith.constant 0 : i32
    %c0_i32_1 = arith.constant 0 : i32
    return %c0_i32, %c0_i32_0 : i32, i32
  }
  func.func @transform_5(%arg0: i32) -> (i32, i32) {
    %c0_i32 = arith.constant 0 : i32
    %c0_i32_0 = arith.constant 0 : i32
    %c0_i32_1 = arith.constant 0 : i32
    return %c0_i32, %c0_i32_0 : i32, i32
  }
  func.func @transform_6(%arg0: i32) -> (i32, i32) {
    %c0_i32 = arith.constant 0 : i32
    %c0_i32_0 = arith.constant 0 : i32
    %c0_i32_1 = arith.constant 0 : i32
    return %c0_i32, %c0_i32_0 : i32, i32
  }
  func.func @transform_7(%arg0: i32) -> (i32, i32) {
    %c0_i32 = arith.constant 0 : i32
    %c0_i32_0 = arith.constant 0 : i32
    return %arg0, %c0_i32 : i32, i32
  }
}

</mosaic_0001>

<llo_original>
// kernel: mace_encoder_to_trunk.1
$region0: #{mace_encoder_to_trunk.1}
  #allocation0 [shape = 'u32[]', space=smem, size = 0x4, offset = 0x4, fixed_abs, tag = 'smem constant byte address 0x4 - core index']
  #allocation1 [shape = 'u32[144,128]{1,0:T(1,128)}', space=vmem, size = 0x12000, scoped, tag = 'internal scratch']
  %s0 = inlined_call_operand.vmem [shape: f32[16,32], index: 0, kind: input, shape index: {}]
  %s1 = inlined_call_operand.vmem [shape: f32[1,32], index: 1, kind: input, shape index: {}]
  %s2 = inlined_call_operand.vmem [shape: f32[1,32], index: 2, kind: input, shape index: {}]
  %s3 = inlined_call_operand.vmem [shape: f32[32,128], index: 3, kind: input, shape index: {}]
  %s4 = inlined_call_operand.vmem [shape: f32[1,128], index: 4, kind: input, shape index: {}]
  %s5 = inlined_call_operand.vmem [shape: f32[128,128], index: 5, kind: input, shape index: {}]
  %s6 = inlined_call_operand.vmem [shape: f32[1,128], index: 6, kind: input, shape index: {}]
  %s7 = inlined_call_operand.vmem [shape: f32[16,128], index: 7, kind: output, shape index: {}]
  %s8 = sld [smem:[#allocation0]]
  $region38: #{mace_encoder_to_trunk.1} parent=0
    _
  %s10 = ssub.s32 1, %s8
  %s11 = scalar_select 0, %s10, %s8
  // Predicated region
  $region2: #{mace_encoder_to_trunk.1} parent=0 // pred_check
    _
  $region3: #{mace_encoder_to_trunk.1} parent=0 // pred_check_branch
    %13 = sbr.rel (0) target = $region5
  $region4: #{mace_encoder_to_trunk.1} parent=0 // pred_region
    _
  $region5: #{mace_encoder_to_trunk.1} parent=0 // pred_fallthru
    _
  // Predicated region
  $region6: #{mace_encoder_to_trunk.1} parent=0 // pred_check
    _
  $region7: #{mace_encoder_to_trunk.1} parent=0 // pred_check_branch
    %15 = sbr.rel (0) target = $region9
  $region8: #{mace_encoder_to_trunk.1} parent=0 // pred_region
    _
  $region9: #{mace_encoder_to_trunk.1} parent=0 // pred_fallthru
    _
  // Predicated region
  $region10: #{mace_encoder_to_trunk.1} parent=0 // pred_check
    _
  $region11: #{mace_encoder_to_trunk.1} parent=0 // pred_check_branch
    %17 = sbr.rel (0) target = $region13
  $region12: #{mace_encoder_to_trunk.1} parent=0 // pred_region
    _
  $region13: #{mace_encoder_to_trunk.1} parent=0 // pred_fallthru
    _
  // Predicated region
  $region14: #{mace_encoder_to_trunk.1} parent=0 // pred_check
    _
  $region15: #{mace_encoder_to_trunk.1} parent=0 // pred_check_branch
    %19 = sbr.rel (0) target = $region17
  $region16: #{mace_encoder_to_trunk.1} parent=0 // pred_region
    _
  $region17: #{mace_encoder_to_trunk.1} parent=0 // pred_fallthru
    _
  // Predicated region
  $region18: #{mace_encoder_to_trunk.1} parent=0 // pred_check
    _
  $region19: #{mace_encoder_to_trunk.1} parent=0 // pred_check_branch
    %21 = sbr.rel (0) target = $region21
  $region20: #{mace_encoder_to_trunk.1} parent=0 // pred_region
    _
  $region21: #{mace_encoder_to_trunk.1} parent=0 // pred_fallthru
    _
  // Predicated region
  $region22: #{mace_encoder_to_trunk.1} parent=0 // pred_check
    _
  $region23: #{mace_encoder_to_trunk.1} parent=0 // pred_check_branch
    %23 = sbr.rel (0) target = $region25
  $region24: #{mace_encoder_to_trunk.1} parent=0 // pred_region
    _
  $region25: #{mace_encoder_to_trunk.1} parent=0 // pred_fallthru
    _
  // Predicated region
  $region26: #{mace_encoder_to_trunk.1} parent=0 // pred_check
    _
  $region27: #{mace_encoder_to_trunk.1} parent=0 // pred_check_branch
    %25 = sbr.rel (0) target = $region29
  $region28: #{mace_encoder_to_trunk.1} parent=0 // pred_region
    _
  $region29: #{mace_encoder_to_trunk.1} parent=0 // pred_fallthru
    _
  %v26 = vld [vmem:[%s0] sm:$0xff]
  %v27 = vld [vmem:[%s0 + $0x8] sm:$0xff]
  %vm28 = vcmask 261120
  %v29 = vsel %vm28, %v26, 0.0
  %30 = vadd.xlane.f32.xlu0 %v29
  %v31 = vpop.xlane.xlu0 %30
  %v32 = vsel %vm28, %v27, 0.0
  %33 = vadd.xlane.f32.xlu0 %v32
  %v34 = vpop.xlane.xlu0 %33
  %v35 = vrcp.pop 32.0
  %v36 = vmul.f32 %v31, %v35
  %v37 = vmul.f32 %v34, %v35
  %v38 = vmul.f32 %v26, %v26
  %v39 = vmul.f32 %v27, %v27
  %v40 = vsel %vm28, %v38, 0.0
  %41 = vadd.xlane.f32.xlu0 %v40
  %v42 = vpop.xlane.xlu0 %41
  %v43 = vsel %vm28, %v39, 0.0
  %44 = vadd.xlane.f32.xlu0 %v43
  %v45 = vpop.xlane.xlu0 %44
  %v46 = vmul.f32 %v42, %v35
  %v47 = vmul.f32 %v45, %v35
  %v48 = vmul.f32 %v36, %v36
  %v49 = vmul.f32 %v37, %v37
  %v50 = vsub.f32 %v46, %v48
  %v51 = vsub.f32 %v47, %v49
  %v52 = vsub.f32 %v26, %v36
  %v53 = vsub.f32 %v27, %v37
  %v54 = vadd.f32 %v50, 1e-05
  %v55 = vadd.f32 %v51, 1e-05
  %v56 = vrsqrt.pop %v54
  %v57 = vrsqrt.pop %v55
  %v58 = vmul.f32 %v52, %v56
  %v59 = vmul.f32 %v53, %v57
  %v60 = vld [vmem:[%s1] sm:$0x1]
  %v62 = vlaneseq
  %v63 = vshrl.u32 %v62, 7
  %v64 = vsub.s32 0, %v63
  %v65 = vrot.slane %v60, %v64
  %v67 = vmul.f32 %v58, %v65
  %v68 = vmul.f32 %v59, %v65
  %v69 = vld [vmem:[%s2] sm:$0x1]
  %v71 = vlaneseq
  %v72 = vshrl.u32 %v71, 7
  %v73 = vsub.s32 0, %v72
  %v74 = vrot.slane %v69, %v73
  %v76 = vadd.f32 %v67, %v74
  %v77 = vadd.f32 %v68, %v74
  %v78 = vld [vmem:[%s3] sm:$0xff]
  %v79 = vld [vmem:[%s3 + $0x8] sm:$0xff]
  %v80 = vld [vmem:[%s3 + $0x10] sm:$0xff]
  %v81 = vld [vmem:[%s3 + $0x18] sm:$0xff]
  %v82 = vld [vmem:[%s4] sm:$0x1]
  %v84 = vlaneseq
  %v85 = vshrl.u32 %v84, 7
  %v86 = vsub.s32 0, %v85
  %v87 = vrot.slane %v82, %v86
  %v90 = vsel %vm28, %v76, 0
  %v93 = vsel %vm28, %v77, 0
  %95 = vmatprep.subr.mxu0 0.0
  %96 = vmatpush1.msra.mxu0 0.0
  %97 = vmatprep.subr.mxu0 0.0
  %98 = vmatpush1.msra.mxu0 0.0
  %99 = vmatprep.subr.mxu0 0.0
  %100 = vmatpush1.msra.mxu0 0.0
  %101 = vmatprep.subr.mxu0 0.0
  %102 = vmatpush1.msra.mxu0 0.0
  %103 = vmatprep.subr.mxu0 0.0
  %104 = vmatpush1.msra.mxu0 0.0
  %105 = vmatprep.subr.mxu0 0.0
  %106 = vmatpush1.msra.mxu0 0.0
  %107 = vmatprep.subr.mxu0 0.0
  %108 = vmatpush1.msra.mxu0 0.0
  %109 = vmatprep.subr.mxu0 0.0
  %110 = vmatpush1.msra.mxu0 0.0
  %111 = vmatprep.subr.mxu0 0.0
  %112 = vmatpush1.msra.mxu0 0.0
  %113 = vmatprep.subr.mxu0 0.0
  %114 = vmatpush1.msra.mxu0 0.0
  %115 = vmatprep.subr.mxu0 0.0
  %116 = vmatpush1.msra.mxu0 0.0
  %117 = vmatprep.subr.mxu0 0.0
  %118 = vmatpush1.msra.mxu0 0.0
  %119 = vmatprep.subr.mxu0 0.0
  %120 = vmatpush1.msra.mxu0 %v81
  %121 = vmatprep.subr.mxu0 0.0
  %122 = vmatpush1.msra.mxu0 %v80
  %123 = vmatprep.subr.mxu0 0.0
  %124 = vmatpush1.msra.mxu0 %v79
  %125 = vmatprep.subr.mxu0 0.0
  %126 = vmatpush1.msra.mxu0 %v78
  %127 = vmatprep.subr.mxu0 0.0
  %128 = vmatpush2.msra.mxu0 0.0
  %129 = vmatprep.subr.mxu0 0.0
  %130 = vmatpush2.msra.mxu0 0.0
  %131 = vmatprep.subr.mxu0 0.0
  %132 = vmatpush2.msra.mxu0 0.0
  %133 = vmatprep.subr.mxu0 0.0
  %134 = vmatpush2.msra.mxu0 0.0
  %135 = vmatprep.subr.mxu0 0.0
  %136 = vmatpush2.msra.mxu0 0.0
  %137 = vmatprep.subr.mxu0 0.0
  %138 = vmatpush2.msra.mxu0 0.0
  %139 = vmatprep.subr.mxu0 0.0
  %140 = vmatpush2.msra.mxu0 0.0
  %141 = vmatprep.subr.mxu0 0.0
  %142 = vmatpush2.msra.mxu0 0.0
  %143 = vmatprep.subr.mxu0 0.0
  %144 = vmatpush2.msra.mxu0 0.0
  %145 = vmatprep.subr.mxu0 0.0
  %146 = vmatpush2.msra.mxu0 0.0
  %147 = vmatprep.subr.mxu0 0.0
  %148 = vmatpush2.msra.mxu0 0.0
  %149 = vmatprep.subr.mxu0 0.0
  %150 = vmatpush2.msra.mxu0 0.0
  %151 = vmatprep.subr.mxu0 0.0
  %152 = vmatpush2.msra.mxu0 0.0
  %153 = vmatprep.subr.mxu0 0.0
  %154 = vmatpush2.msra.mxu0 0.0
  %155 = vmatprep.subr.mxu0 0.0
  %156 = vmatpush2.msra.mxu0 0.0
  %157 = vmatprep.subr.mxu0 0.0
  %158 = vmatpush2.msra.mxu0 0.0
  %159 = vmatprep.mubr.f32.mxu0 0.0
  %160 = vmatmul.mubr.f32.gmra.mxu0 %v90
  %v161 = vpop.f32.mrf.mxu0
  %v162 = vadd.f32 %v87, %v161
  %v163 = vpop.f32.mrf.mxu0
  %164 = vmatprep.mubr.f32.mxu0 0.0
  %165 = vmatmul.mubr.f32.gmra.mxu0 %v93
  %v166 = vpop.f32.mrf.mxu0
  %v167 = vadd.f32 %v87, %v166
  %v168 = vpop.f32.mrf.mxu0
  %169 = vdwg.mxu0
  %v170 = vmax.f32 %v162, 0.0
  %v171 = vmax.f32 %v167, 0.0
  %v172 = vld [vmem:[%s5] sm:$0xff]
  %v173 = vld [vmem:[%s5 + $0x8] sm:$0xff]
  %v174 = vld [vmem:[%s5 + $0x10] sm:$0xff]
  %v175 = vld [vmem:[%s5 + $0x18] sm:$0xff]
  %v176 = vld [vmem:[%s5 + $0x20] sm:$0xff]
  %v177 = vld [vmem:[%s5 + $0x28] sm:$0xff]
  %v178 = vld [vmem:[%s5 + $0x30] sm:$0xff]
  %v179 = vld [vmem:[%s5 + $0x38] sm:$0xff]
  %v180 = vld [vmem:[%s5 + $0x40] sm:$0xff]
  %v181 = vld [vmem:[%s5 + $0x48] sm:$0xff]
  %v182 = vld [vmem:[%s5 + $0x50] sm:$0xff]
  %v183 = vld [vmem:[%s5 + $0x58] sm:$0xff]
  %v184 = vld [vmem:[%s5 + $0x60] sm:$0xff]
  %v185 = vld [vmem:[%s5 + $0x68] sm:$0xff]
  %v186 = vld [vmem:[%s5 + $0x70] sm:$0xff]
  %v187 = vld [vmem:[%s5 + $0x78] sm:$0xff]
  %v188 = vld [vmem:[%s6] sm:$0x1]
  %v190 = vlaneseq
  %v191 = vshrl.u32 %v190, 7
  %v192 = vsub.s32 0, %v191
  %v193 = vrot.slane %v188, %v192
  %195 = vmatprep.subr.mxu0 0.0
  %196 = vmatpush1.msra.mxu0 %v187
  %197 = vmatprep.subr.mxu0 0.0
  %198 = vmatpush1.msra.mxu0 %v186
  %199 = vmatprep.subr.mxu0 0.0
  %200 = vmatpush1.msra.mxu0 %v185
  %201 = vmatprep.subr.mxu0 0.0
  %202 = vmatpush1.msra.mxu0 %v184
  %203 = vmatprep.subr.mxu0 0.0
  %204 = vmatpush1.msra.mxu0 %v183
  %205 = vmatprep.subr.mxu0 0.0
  %206 = vmatpush1.msra.mxu0 %v182
  %207 = vmatprep.subr.mxu0 0.0
  %208 = vmatpush1.msra.mxu0 %v181
  %209 = vmatprep.subr.mxu0 0.0
  %210 = vmatpush1.msra.mxu0 %v180
  %211 = vmatprep.subr.mxu0 0.0
  %212 = vmatpush1.msra.mxu0 %v179
  %213 = vmatprep.subr.mxu0 0.0
  %214 = vmatpush1.msra.mxu0 %v178
  %215 = vmatprep.subr.mxu0 0.0
  %216 = vmatpush1.msra.mxu0 %v177
  %217 = vmatprep.subr.mxu0 0.0
  %218 = vmatpush1.msra.mxu0 %v176
  %219 = vmatprep.subr.mxu0 0.0
  %220 = vmatpush1.msra.mxu0 %v175
  %221 = vmatprep.subr.mxu0 0.0
  %222 = vmatpush1.msra.mxu0 %v174
  %223 = vmatprep.subr.mxu0 0.0
  %224 = vmatpush1.msra.mxu0 %v173
  %225 = vmatprep.subr.mxu0 0.0
  %226 = vmatpush1.msra.mxu0 %v172
  %227 = vmatprep.subr.mxu0 0.0
  %228 = vmatpush2.msra.mxu0 0.0
  %229 = vmatprep.subr.mxu0 0.0
  %230 = vmatpush2.msra.mxu0 0.0
  %231 = vmatprep.subr.mxu0 0.0
  %232 = vmatpush2.msra.mxu0 0.0
  %233 = vmatprep.subr.mxu0 0.0
  %234 = vmatpush2.msra.mxu0 0.0
  %235 = vmatprep.subr.mxu0 0.0
  %236 = vmatpush2.msra.mxu0 0.0
  %237 = vmatprep.subr.mxu0 0.0
  %238 = vmatpush2.msra.mxu0 0.0
  %239 = vmatprep.subr.mxu0 0.0
  %240 = vmatpush2.msra.mxu0 0.0
  %241 = vmatprep.subr.mxu0 0.0
  %242 = vmatpush2.msra.mxu0 0.0
  %243 = vmatprep.subr.mxu0 0.0
  %244 = vmatpush2.msra.mxu0 0.0
  %245 = vmatprep.subr.mxu0 0.0
  %246 = vmatpush2.msra.mxu0 0.0
  %247 = vmatprep.subr.mxu0 0.0
  %248 = vmatpush2.msra.mxu0 0.0
  %249 = vmatprep.subr.mxu0 0.0
  %250 = vmatpush2.msra.mxu0 0.0
  %251 = vmatprep.subr.mxu0 0.0
  %252 = vmatpush2.msra.mxu0 0.0
  %253 = vmatprep.subr.mxu0 0.0
  %254 = vmatpush2.msra.mxu0 0.0
  %255 = vmatprep.subr.mxu0 0.0
  %256 = vmatpush2.msra.mxu0 0.0
  %257 = vmatprep.subr.mxu0 0.0
  %258 = vmatpush2.msra.mxu0 0.0
  %259 = vmatprep.mubr.f32.mxu0 0.0
  %260 = vmatmul.mubr.f32.gmra.mxu0 %v170
  %v261 = vpop.f32.mrf.mxu0
  %v262 = vadd.f32 %v193, %v261
  %v263 = vpop.f32.mrf.mxu0
  %264 = vmatprep.mubr.f32.mxu0 0.0
  %265 = vmatmul.mubr.f32.gmra.mxu0 %v171
  %v266 = vpop.f32.mrf.mxu0
  %v267 = vadd.f32 %v193, %v266
  %v268 = vpop.f32.mrf.mxu0
  %269 = vdwg.mxu0
  %270 = vst [vmem:[%s7] sm:$0xff] %v262
  %271 = vst [vmem:[%s7 + $0x8] sm:$0xff] %v267
  // Predicated region
  $region30: #{mace_encoder_to_trunk.1} parent=0 // pred_check
    _
  $region31: #{mace_encoder_to_trunk.1} parent=0 // pred_check_branch
    %273 = sbr.rel (0) target = $region33
  $region32: #{mace_encoder_to_trunk.1} parent=0 // pred_region
    _
  $region33: #{mace_encoder_to_trunk.1} parent=0 // pred_fallthru
    _
  // Predicated region
  $region34: #{mace_encoder_to_trunk.1} parent=0 // pred_check
    _
  $region35: #{mace_encoder_to_trunk.1} parent=0 // pred_check_branch
    %275 = sbr.rel (0) target = $region37
  $region36: #{mace_encoder_to_trunk.1} parent=0 // pred_region
    _
  $region37: #{mace_encoder_to_trunk.1} parent=0 // pred_fallthru
    _

</llo_original>
